<compile_context>
chip_gen: v7x
topology: tpu7x:2x2x1
jax: 0.10.0
libtpu: 0.0.40
codegen_flags: <defaults>
</compile_context>

<pallas_src>
import numpy as np
import jax
import jax.numpy as jnp
from jax.experimental import pallas as pl
from jax.experimental.pallas import tpu as pltpu


# ----------------------------- Pallas kernel -------------------------------
def _grid_sample_sep_kernel(wyb_ref, wxt_ref, x_ref, o_ref):
    # wyb_ref : (nb, C*T, C*S) block-diagonal row-interp weights (this step's block)
    # wxt_ref : (nb, S, T)     column-interp weights, pre-transposed
    # x_ref   : (nb, C*S, S)   images, channels stacked along rows (free NCHW reshape)
    # o_ref   : (nb, C*T, T)   outputs (wrapper reshapes to (N, C, T, T) for free)
    nb = x_ref.shape[0]
    cdt = wyb_ref.dtype                          # compute dtype (bf16 or f32)

    def one_image(b):
        xb = x_ref[b].astype(cdt)                # (C*S, S), cast in VMEM (no-op if equal)
        wxt = wxt_ref[b]                         # (S, T)
        wyb = wyb_ref[b]                         # (C*T, C*S)
        # Column interpolation, all channels in one 2-D matmul.
        tmp = jnp.dot(xb, wxt, preferred_element_type=jnp.float32).astype(cdt)
        # Row interpolation, all channels in one wide 2-D matmul (block-diag weights).
        out = jnp.dot(wyb, tmp, preferred_element_type=jnp.float32)
        o_ref[b] = out.astype(o_ref.dtype)

    if nb <= 8:
        for b in range(nb):                      # small block: static unroll
            one_image(b)
    else:
        unroll = 4 if nb % 4 == 0 else (2 if nb % 2 == 0 else 1)

        def body(b, carry):
            one_image(b)
            return carry

        jax.lax.fori_loop(0, nb, body, 0, unroll=unroll)


# --------------------------- VMEM sizing helpers ----------------------------
def _round_up(v, m):
    return ((v + m - 1) // m) * m


def _vmem_block_bytes(nb, C, S, T, x_isz, w_isz, o_isz):
    """Lane/sublane-padding-aware VMEM estimate for one pipelined grid step."""
    CS, CT = C * S, C * T
    x_b = nb * _round_up(CS, 8) * _round_up(S, 128) * x_isz
    wyb_b = nb * _round_up(CT, 8) * _round_up(CS, 128) * w_isz
    wxt_b = nb * _round_up(S, 8) * _round_up(T, 128) * w_isz
    out_b = nb * _round_up(CT, 8) * _round_up(T, 128) * o_isz
    blocks = 2 * (x_b + wyb_b + wxt_b + out_b)        # double-buffered pipeline
    # f32 temporaries live inside the (unroll<=4) image loop.
    tmp_b = 4 * (_round_up(CS, 8) * _round_up(S, 128) * 4
                 + _round_up(CS, 8) * _round_up(T, 128) * 4
                 + _round_up(CT, 8) * _round_up(T, 128) * 4)
    return blocks + tmp_b


def _vmem_capacity_bytes():
    try:
        return int(pltpu.get_tpu_info().vmem_capacity_bytes)
    except Exception:
        return None


def _pick_block_batch(N, C, S, T, x_isz, w_isz, o_isz):
    cap_bytes = _vmem_capacity_bytes()
    # Per-generation budget: ~1/5 of physical VMEM, clamped to [8, 24] MiB.
    # v5e/v6e: 128 MiB phys -> 24 MiB budget (nb up to 64);
    # v7x:      64 MiB phys -> ~12.8 MiB budget (nb ~32).
    if cap_bytes:
        budget = min(24 << 20, max(8 << 20, cap_bytes // 5))
    else:
        budget = 12 << 20
    # Keep enough grid steps for megacore sharding / pipeline depth on big batches.
    if N >= 64:
        cap_nb = min(64, N // 8)
    elif N >= 16:
        cap_nb = max(1, N // 4)
    else:
        cap_nb = N
    best = 1
    for nb in range(1, cap_nb + 1):
        if N % nb:                    # divisors only -> no HBM padding copy of x
            continue
        if _vmem_block_bytes(nb, C, S, T, x_isz, w_isz, o_isz) <= budget:
            best = nb
    return best


# ------------------------------ pallas_call ----------------------------------
def _pallas_separable_sample(wy_blk, wxt, x, C, T, block_batch=None):
    # wy_blk: (N, C*T, C*S), wxt: (N, S, T) in compute dtype; x: (N, C, S, S) native dtype
    N = x.shape[0]
    S = x.shape[2]
    CS, CT = C * S, C * T
    out_dtype = x.dtype
    x_isz = x.dtype.itemsize
    w_isz = wy_blk.dtype.itemsize

    if block_batch is None:
        nb = _pick_block_batch(N, C, S, T, x_isz, w_isz, x_isz)
    else:
        nb = int(block_batch)

    n_pad = ((N + nb - 1) // nb) * nb
    if n_pad != N:
        # Only reachable with an explicit block_batch that does not divide N;
        # the auto-picker chooses a divisor of N to avoid this extra HBM copy of x.
        pad = n_pad - N
        x = jnp.pad(x, ((0, pad), (0, 0), (0, 0), (0, 0)))
        wy_blk = jnp.pad(wy_blk, ((0, pad), (0, 0), (0, 0)))
        wxt = jnp.pad(wxt, ((0, pad), (0, 0), (0, 0)))

    x_flat = x.reshape(n_pad, CS, S)             # row-major metadata reshape (free)

    vmem_need = _vmem_block_bytes(nb, C, S, T, x_isz, w_isz, x_isz)
    cap_bytes = _vmem_capacity_bytes()
    vmem_ceiling = (cap_bytes * 3 // 4) if cap_bytes else (48 << 20)
    vmem_limit = int(min(vmem_ceiling, max(vmem_need + (8 << 20), 32 << 20)))

    out = pl.pallas_call(
        _grid_sample_sep_kernel,
        out_shape=jax.ShapeDtypeStruct((n_pad, CT, T), out_dtype),
        grid_spec=pltpu.PrefetchScalarGridSpec(
            num_scalar_prefetch=0,
            grid=(n_pad // nb,),
            in_specs=[
                # per-step blocks (a few KiB each) -- never resident across the grid
                pl.BlockSpec((nb, CT, CS), lambda i: (i, 0, 0)),   # Wy block-diag
                pl.BlockSpec((nb, S, T), lambda i: (i, 0, 0)),     # WxT
                pl.BlockSpec((nb, CS, S), lambda i: (i, 0, 0)),    # images
            ],
            out_specs=pl.BlockSpec((nb, CT, T), lambda i: (i, 0, 0)),
        ),
        compiler_params=pltpu.CompilerParams(
            dimension_semantics=("parallel",),     # independent batch blocks
            vmem_limit_bytes=vmem_limit),
    )(wy_blk, wxt, x_flat)

    return out[:N].reshape(N, C, T, T)


# ------------------------------ JAX glue ------------------------------------
def _interp_weights(coords, size):
    """1-D bilinear interpolation weights, zeros padding, align_corners=True.

    coords: (N, T) normalized coords in grid_sample convention.
    Returns (N, T, size) float32 weight matrix."""
    pos = (coords + 1.0) * 0.5 * (size - 1)           # unnormalize
    i0 = jnp.floor(pos)
    i1 = i0 + 1.0
    w1 = pos - i0
    w0 = 1.0 - w1
    in0 = ((i0 >= 0) & (i0 <= size - 1)).astype(pos.dtype)
    in1 = ((i1 >= 0) & (i1 <= size - 1)).astype(pos.dtype)
    idx = jnp.arange(size, dtype=pos.dtype)           # (size,)
    W = (w0 * in0)[..., None] * (idx == i0[..., None]).astype(pos.dtype) \
      + (w1 * in1)[..., None] * (idx == i1[..., None]).astype(pos.dtype)
    return W.astype(jnp.float32)


class RandomTransformPallas:
    """JAX/Pallas port of codes/core/attacks/SleeperAgent.py::RandomTransform.

    mode='bilinear', align_corners=True, padding_mode='zeros' (PyTorch defaults).
    """

    def __init__(self, source_size, target_size, shift=8, fliplr=True,
                 flipud=False, mode='bilinear', align=True):
        assert mode == 'bilinear' and align
        self.source_size = int(source_size)
        self.target_size = int(target_size)
        k = float(target_size) / float(source_size)
        # build_grid: same linspace along rows (y) and columns (x)
        self.lin = jnp.linspace(-1.0, k, target_size).astype(jnp.float32)    # (T,)
        # delta = torch.linspace(0, 1, source_size)[shift] == shift / (source_size - 1)
        self.delta = jnp.linspace(0.0, 1.0, source_size).astype(jnp.float32)[shift]
        self.fliplr = fliplr
        self.flipud = flipud

    def shifted_coords(self, randgen):
        # randgen: (N, 4)
        x_shift = (randgen[:, 0] - 0.5) * 2.0 * self.delta
        y_shift = (randgen[:, 1] - 0.5) * 2.0 * self.delta
        gx = self.lin[None, :] + x_shift[:, None]      # (N, T) x-coord per output column
        gy = self.lin[None, :] + y_shift[:, None]      # (N, T) y-coord per output row
        if self.fliplr:
            gx = jnp.where((randgen[:, 2] > 0.5)[:, None], -gx, gx)
        if self.flipud:
            gy = jnp.where((randgen[:, 3] > 0.5)[:, None], -gy, gy)
        return gx, gy

    def __call__(self, x, randgen=None, block_batch=None):
        # x: (N, C, S, S), randgen: (N, 4) float32
        N, C, S, S2 = x.shape
        assert S == self.source_size and S2 == self.source_size
        T = self.target_size
        if randgen is None:
            # TODO(synk): the PyTorch original draws torch.rand at call time; pass
            # randgen explicitly for reproducibility (fixed-key fallback here).
            randgen = jax.random.uniform(jax.random.PRNGKey(0), (N, 4),
                                         dtype=jnp.float32)
        gx, gy = self.shifted_coords(randgen)
        Wy = _interp_weights(gy, S)                    # (N, T, S) f32
        Wx = _interp_weights(gx, S)                    # (N, T, S) f32

        compute_dtype = jnp.bfloat16 if x.dtype == jnp.bfloat16 else jnp.float32
        WxT = jnp.swapaxes(Wx, 1, 2).astype(compute_dtype)        # (N, S, T)
        # Block-diagonal expansion over channels:
        #   Wy_blk[n, c*T+i, d*S+s] = (c == d) * Wy[n, i, s]
        # C is small for images (<=4), so the C^2 weight blow-up (hidden under the
        # MXU work by the pipeline) is cheap and it turns the row interpolation into
        # ONE wide 2-D matmul per image instead of C narrow ones.
        eye = jnp.eye(C, dtype=jnp.float32)
        Wy_blk = jnp.einsum('cd,nts->nctds', eye, Wy).reshape(N, C * T, C * S)
        Wy_blk = Wy_blk.astype(compute_dtype)
        return _pallas_separable_sample(Wy_blk, WxT, x, C, T,
                                        block_batch=block_batch)


# ----------------------- numpy reference (for checking) ---------------------
def _ref_grid_sample_separable(x, gx, gy):
    N, C, H, W = x.shape
    T = gx.shape[1]
    out = np.zeros((N, C, T, T), np.float32)
    x = np.asarray(x, dtype=np.float32)
    for n in range(N):
        ix = (gx[n] + 1.0) / 2.0 * (W - 1)
        iy = (gy[n] + 1.0) / 2.0 * (H - 1)
        for i in range(T):
            for j in range(T):
                fx, fy = float(ix[j]), float(iy[i])
                x0, y0 = int(np.floor(fx)), int(np.floor(fy))
                for yy, wyv in ((y0, 1.0 - (fy - y0)), (y0 + 1, fy - y0)):
                    for xx, wxv in ((x0, 1.0 - (fx - x0)), (x0 + 1, fx - x0)):
                        if 0 <= yy < H and 0 <= xx < W:
                            out[n, :, i, j] += wyv * wxv * x[n, :, yy, xx]
    return out


if __name__ == "__main__":
    key = jax.random.PRNGKey(0)
    kx, kr, kx2, kr2, kx3, kr3 = jax.random.split(key, 6)

    # --- test 1: small shapes, default (static-unroll) path ---
    N, C, S, T, SHIFT = 2, 4, 16, 8, 4
    x = jax.random.normal(kx, (N, C, S, S), dtype=jnp.float32)
    randgen = jax.random.uniform(kr, (N, 4), dtype=jnp.float32)
    mod = RandomTransformPallas(source_size=S, target_size=T, shift=SHIFT,
                                fliplr=True, flipud=False)
    out = jax.block_until_ready(mod(x, randgen))
    gx, gy = mod.shifted_coords(randgen)
    ref = _ref_grid_sample_separable(np.asarray(x), np.asarray(gx), np.asarray(gy))
    np.testing.assert_allclose(np.asarray(out), ref, atol=1e-4, rtol=1e-4)

    # --- test 2: larger batch -> in-kernel fori_loop path (nb=12, unroll=4) ---
    N2 = 12
    x2 = jax.random.normal(kx2, (N2, C, S, S), dtype=jnp.float32)
    randgen2 = jax.random.uniform(kr2, (N2, 4), dtype=jnp.float32)
    out2 = jax.block_until_ready(mod(x2, randgen2))
    gx2, gy2 = mod.shifted_coords(randgen2)
    ref2 = _ref_grid_sample_separable(np.asarray(x2), np.asarray(gx2), np.asarray(gy2))
    np.testing.assert_allclose(np.asarray(out2), ref2, atol=1e-4, rtol=1e-4)

    # --- test 3: explicit non-dividing block_batch -> multi-step grid + tail padding ---
    out3 = jax.block_until_ready(mod(x2, randgen2, block_batch=5))
    np.testing.assert_allclose(np.asarray(out3), ref2, atol=1e-4, rtol=1e-4)

    # --- test 4: bf16 inputs stay bf16 through the MXU (f32 accumulation) ---
    x4 = jax.random.normal(kx3, (4, C, S, S), dtype=jnp.float32)
    randgen4 = jax.random.uniform(kr3, (4, 4), dtype=jnp.float32)
    out4 = jax.block_until_ready(mod(x4.astype(jnp.bfloat16), randgen4))
    gx4, gy4 = mod.shifted_coords(randgen4)
    ref4 = _ref_grid_sample_separable(np.asarray(x4), np.asarray(gx4), np.asarray(gy4))
    np.testing.assert_allclose(np.asarray(out4.astype(jnp.float32)), ref4,
                               atol=1e-1, rtol=1e-1)

    print("KERNEL_OK")
</pallas_src>

<mosaic_0001>
module attributes {stable_mosaic.version = 11 : i64} {
  func.func @_grid_sample_sep_kernel(%arg0: i32, %arg1: memref<2x32x64xf32, #tpu.memory_space<vmem>>, %arg2: memref<2x16x8xf32, #tpu.memory_space<vmem>>, %arg3: memref<2x64x16xf32, #tpu.memory_space<vmem>>, %arg4: memref<2x32x8xf32, #tpu.memory_space<vmem>>) attributes {dimension_semantics = [#tpu.dimension_semantics<parallel>], iteration_bounds = array<i64: 1>, scalar_prefetch = 0 : i64, scratch_operands = 0 : i64, tpu.core_type = #tpu.core_type<tc>, window_params = [{transform_indices = @transform_0, window_bounds = array<i64: 2, 32, 64>}, {transform_indices = @transform_1, window_bounds = array<i64: 2, 16, 8>}, {transform_indices = @transform_2, window_bounds = array<i64: 2, 64, 16>}, {transform_indices = @transform_3, window_bounds = array<i64: 2, 32, 8>}]} {
    %c0 = arith.constant 0 : index
    %c0_0 = arith.constant 0 : index
    %c0_1 = arith.constant 0 : index
    %0 = vector.load %arg3[%c0, %c0_0, %c0_1] : memref<2x64x16xf32, #tpu.memory_space<vmem>>, vector<1x64x16xf32>
    %1 = vector.shape_cast %0 : vector<1x64x16xf32> to vector<64x16xf32>
    %c0_2 = arith.constant 0 : index
    %c0_3 = arith.constant 0 : index
    %c0_4 = arith.constant 0 : index
    %2 = vector.load %arg2[%c0_2, %c0_3, %c0_4] : memref<2x16x8xf32, #tpu.memory_space<vmem>>, vector<1x16x8xf32>
    %3 = vector.shape_cast %2 : vector<1x16x8xf32> to vector<16x8xf32>
    %c0_5 = arith.constant 0 : index
    %c0_6 = arith.constant 0 : index
    %c0_7 = arith.constant 0 : index
    %4 = vector.load %arg1[%c0_5, %c0_6, %c0_7] : memref<2x32x64xf32, #tpu.memory_space<vmem>>, vector<1x32x64xf32>
    %5 = vector.shape_cast %4 : vector<1x32x64xf32> to vector<32x64xf32>
    %cst = arith.constant dense<0.000000e+00> : vector<64x8xf32>
    %6 = tpu.matmul %1, %3, %cst {dimension_numbers = #tpu.dot_dimension_numbers<[1], [0], [0], [1], [0, 0, 1, 1], [], []>} : vector<64x16xf32>, vector<16x8xf32>, vector<64x8xf32> -> vector<64x8xf32>
    %cst_8 = arith.constant dense<0.000000e+00> : vector<32x8xf32>
    %7 = tpu.matmul %5, %6, %cst_8 {dimension_numbers = #tpu.dot_dimension_numbers<[1], [0], [0], [1], [0, 0, 1, 1], [], []>} : vector<32x64xf32>, vector<64x8xf32>, vector<32x8xf32> -> vector<32x8xf32>
    %c0_9 = arith.constant 0 : index
    %c0_10 = arith.constant 0 : index
    %c0_11 = arith.constant 0 : index
    %8 = vector.load %arg4[%c0_9, %c0_10, %c0_11] : memref<2x32x8xf32, #tpu.memory_space<vmem>>, vector<1x32x8xf32>
    %9 = vector.shape_cast %8 : vector<1x32x8xf32> to vector<32x8xf32>
    %10 = vector.shape_cast %7 : vector<32x8xf32> to vector<1x32x8xf32>
    tpu.vector_store %arg4[%c0_9, %c0_10, %c0_11], %10 {strides = array<i32>} : memref<2x32x8xf32, #tpu.memory_space<vmem>>, vector<1x32x8xf32>,
    %c1 = arith.constant 1 : index
    %c0_12 = arith.constant 0 : index
    %c0_13 = arith.constant 0 : index
    %11 = vector.load %arg3[%c1, %c0_12, %c0_13] : memref<2x64x16xf32, #tpu.memory_space<vmem>>, vector<1x64x16xf32>
    %12 = vector.shape_cast %11 : vector<1x64x16xf32> to vector<64x16xf32>
    %c1_14 = arith.constant 1 : index
    %c0_15 = arith.constant 0 : index
    %c0_16 = arith.constant 0 : index
    %13 = vector.load %arg2[%c1_14, %c0_15, %c0_16] : memref<2x16x8xf32, #tpu.memory_space<vmem>>, vector<1x16x8xf32>
    %14 = vector.shape_cast %13 : vector<1x16x8xf32> to vector<16x8xf32>
    %c1_17 = arith.constant 1 : index
    %c0_18 = arith.constant 0 : index
    %c0_19 = arith.constant 0 : index
    %15 = vector.load %arg1[%c1_17, %c0_18, %c0_19] : memref<2x32x64xf32, #tpu.memory_space<vmem>>, vector<1x32x64xf32>
    %16 = vector.shape_cast %15 : vector<1x32x64xf32> to vector<32x64xf32>
    %cst_20 = arith.constant dense<0.000000e+00> : vector<64x8xf32>
    %17 = tpu.matmul %12, %14, %cst_20 {dimension_numbers = #tpu.dot_dimension_numbers<[1], [0], [0], [1], [0, 0, 1, 1], [], []>} : vector<64x16xf32>, vector<16x8xf32>, vector<64x8xf32> -> vector<64x8xf32>
    %cst_21 = arith.constant dense<0.000000e+00> : vector<32x8xf32>
    %18 = tpu.matmul %16, %17, %cst_21 {dimension_numbers = #tpu.dot_dimension_numbers<[1], [0], [0], [1], [0, 0, 1, 1], [], []>} : vector<32x64xf32>, vector<64x8xf32>, vector<32x8xf32> -> vector<32x8xf32>
    %c1_22 = arith.constant 1 : index
    %c0_23 = arith.constant 0 : index
    %c0_24 = arith.constant 0 : index
    %19 = vector.load %arg4[%c1_22, %c0_23, %c0_24] : memref<2x32x8xf32, #tpu.memory_space<vmem>>, vector<1x32x8xf32>
    %20 = vector.shape_cast %19 : vector<1x32x8xf32> to vector<32x8xf32>
    %21 = vector.shape_cast %18 : vector<32x8xf32> to vector<1x32x8xf32>
    tpu.vector_store %arg4[%c1_22, %c0_23, %c0_24], %21 {strides = array<i32>} : memref<2x32x8xf32, #tpu.memory_space<vmem>>, vector<1x32x8xf32>,
    return
  }
  func.func @transform_0(%arg0: i32) -> (i32, i32, i32) {
    %c0_i32 = arith.constant 0 : i32
    %c0_i32_0 = arith.constant 0 : i32
    %c0_i32_1 = arith.constant 0 : i32
    return %arg0, %c0_i32, %c0_i32_0 : i32, i32, i32
  }
  func.func @transform_1(%arg0: i32) -> (i32, i32, i32) {
    %c0_i32 = arith.constant 0 : i32
    %c0_i32_0 = arith.constant 0 : i32
    %c0_i32_1 = arith.constant 0 : i32
    return %arg0, %c0_i32, %c0_i32_0 : i32, i32, i32
  }
  func.func @transform_2(%arg0: i32) -> (i32, i32, i32) {
    %c0_i32 = arith.constant 0 : i32
    %c0_i32_0 = arith.constant 0 : i32
    %c0_i32_1 = arith.constant 0 : i32
    return %arg0, %c0_i32, %c0_i32_0 : i32, i32, i32
  }
  func.func @transform_3(%arg0: i32) -> (i32, i32, i32) {
    %c0_i32 = arith.constant 0 : i32
    %c0_i32_0 = arith.constant 0 : i32
    %c0_i32_1 = arith.constant 0 : i32
    return %arg0, %c0_i32, %c0_i32_0 : i32, i32, i32
  }
}

</mosaic_0001>

<llo_original>
// kernel: tpu_custom_call.1
$region0: #{tpu_custom_call.1}
  #allocation0 [shape = 'u32[]', space=smem, size = 0x4, offset = 0x4, fixed_abs, tag = 'smem constant byte address 0x4 - core index']
  #allocation1 [shape = 'u32[144,128]{1,0:T(1,128)}', space=vmem, size = 0x12000, scoped, tag = 'internal scratch']
  %s0 = inlined_call_operand.vmem [shape: f32[2,32,64], index: 0, kind: input, shape index: {}]
  %s1 = inlined_call_operand.vmem [shape: f32[2,16,8], index: 1, kind: input, shape index: {}]
  %s2 = inlined_call_operand.vmem [shape: f32[2,64,16], index: 2, kind: input, shape index: {}]
  %s3 = inlined_call_operand.vmem [shape: f32[2,32,8], index: 3, kind: output, shape index: {}]
  %s4 = sld [smem:[#allocation0]]
  $region22: #{tpu_custom_call.1} parent=0
    _
  %s6 = ssub.s32 1, %s4
  %s7 = scalar_select 0, %s6, %s4
  // Predicated region
  $region2: #{tpu_custom_call.1} parent=0 // pred_check
    _
  $region3: #{tpu_custom_call.1} parent=0 // pred_check_branch
    %9 = sbr.rel (0) target = $region5
  $region4: #{tpu_custom_call.1} parent=0 // pred_region
    _
  $region5: #{tpu_custom_call.1} parent=0 // pred_fallthru
    _
  // Predicated region
  $region6: #{tpu_custom_call.1} parent=0 // pred_check
    _
  $region7: #{tpu_custom_call.1} parent=0 // pred_check_branch
    %11 = sbr.rel (0) target = $region9
  $region8: #{tpu_custom_call.1} parent=0 // pred_region
    _
  $region9: #{tpu_custom_call.1} parent=0 // pred_fallthru
    _
  // Predicated region
  $region10: #{tpu_custom_call.1} parent=0 // pred_check
    _
  $region11: #{tpu_custom_call.1} parent=0 // pred_check_branch
    %13 = sbr.rel (0) target = $region13
  $region12: #{tpu_custom_call.1} parent=0 // pred_region
    _
  $region13: #{tpu_custom_call.1} parent=0 // pred_fallthru
    _
  %v14 = vld [vmem:[%s2] sm:$0xff]
  %v15 = vld [vmem:[%s2 + $0x8] sm:$0xff]
  %v16 = vld [vmem:[%s2 + $0x10] sm:$0xff]
  %v17 = vld [vmem:[%s2 + $0x18] sm:$0xff]
  %v18 = vld [vmem:[%s2 + $0x20] sm:$0xff]
  %v19 = vld [vmem:[%s2 + $0x28] sm:$0xff]
  %v20 = vld [vmem:[%s2 + $0x30] sm:$0xff]
  %v21 = vld [vmem:[%s2 + $0x38] sm:$0xff]
  %v22 = vld [vmem:[%s1] sm:$0xff]
  %v23 = vld [vmem:[%s1 + $0x8] sm:$0xff]
  %v24 = vld [vmem:[%s0] sm:$0xff]
  %v25 = vld [vmem:[%s0 + $0x8] sm:$0xff]
  %v26 = vld [vmem:[%s0 + $0x10] sm:$0xff]
  %v27 = vld [vmem:[%s0 + $0x18] sm:$0xff]
  %vm28 = vcmask 130048
  %v30 = vsel %vm28, %v14, 0
  %v33 = vsel %vm28, %v15, 0
  %v36 = vsel %vm28, %v16, 0
  %v39 = vsel %vm28, %v17, 0
  %v42 = vsel %vm28, %v18, 0
  %v45 = vsel %vm28, %v19, 0
  %v48 = vsel %vm28, %v20, 0
  %v51 = vsel %vm28, %v21, 0
  %53 = vmatprep.subr.mxu0 0.0
  %54 = vmatpush1.msra.mxu0 %v22
  %55 = vmatprep.subr.mxu0 0.0
  %56 = vmatpush1.msra.mxu0 %v23
  %57 = vmatprep.subr.mxu0 0.0
  %58 = vmatpush1.msra.mxu0 0.0
  %59 = vmatprep.subr.mxu0 0.0
  %60 = vmatpush1.msra.mxu0 0.0
  %61 = vmatprep.subr.mxu0 0.0
  %62 = vmatpush1.msra.mxu0 0.0
  %63 = vmatprep.subr.mxu0 0.0
  %64 = vmatpush1.msra.mxu0 0.0
  %65 = vmatprep.subr.mxu0 0.0
  %66 = vmatpush1.msra.mxu0 0.0
  %67 = vmatprep.subr.mxu0 0.0
  %68 = vmatpush1.msra.mxu0 0.0
  %69 = vmatprep.subr.mxu0 0.0
  %70 = vmatpush1.msra.mxu0 0.0
  %71 = vmatprep.subr.mxu0 0.0
  %72 = vmatpush1.msra.mxu0 0.0
  %73 = vmatprep.subr.mxu0 0.0
  %74 = vmatpush1.msra.mxu0 0.0
  %75 = vmatprep.subr.mxu0 0.0
  %76 = vmatpush1.msra.mxu0 0.0
  %77 = vmatprep.subr.mxu0 0.0
  %78 = vmatpush1.msra.mxu0 0.0
  %79 = vmatprep.subr.mxu0 0.0
  %80 = vmatpush1.msra.mxu0 0.0
  %81 = vmatprep.subr.mxu0 0.0
  %82 = vmatpush1.msra.mxu0 0.0
  %83 = vmatprep.subr.mxu0 0.0
  %84 = vmatpush1.msra.mxu0 0.0
  %85 = vmatprep.subr.mxu0 0.0
  %86 = vmatpush1.msra.mxu0 0.0
  %87 = vmatprep.subr.mxu0 0.0
  %88 = vmatpush1.msra.mxu0 0.0
  %89 = vmatprep.subr.mxu0 0.0
  %90 = vmatpush1.msra.mxu0 0.0
  %91 = vmatprep.subr.mxu0 0.0
  %92 = vmatpush1.msra.mxu0 0.0
  %93 = vmatprep.subr.mxu0 0.0
  %94 = vmatpush1.msra.mxu0 0.0
  %95 = vmatprep.subr.mxu0 0.0
  %96 = vmatpush1.msra.mxu0 0.0
  %97 = vmatprep.subr.mxu0 0.0
  %98 = vmatpush1.msra.mxu0 0.0
  %99 = vmatprep.subr.mxu0 0.0
  %100 = vmatpush1.msra.mxu0 0.0
  %101 = vmatprep.subr.mxu0 0.0
  %102 = vmatpush1.msra.mxu0 0.0
  %103 = vmatprep.subr.mxu0 0.0
  %104 = vmatpush1.msra.mxu0 0.0
  %105 = vmatprep.subr.mxu0 0.0
  %106 = vmatpush1.msra.mxu0 0.0
  %107 = vmatprep.subr.mxu0 0.0
  %108 = vmatpush1.msra.mxu0 0.0
  %109 = vmatprep.subr.mxu0 0.0
  %110 = vmatpush1.msra.mxu0 0.0
  %111 = vmatprep.subr.mxu0 0.0
  %112 = vmatpush1.msra.mxu0 0.0
  %113 = vmatprep.subr.mxu0 0.0
  %114 = vmatpush1.msra.mxu0 0.0
  %115 = vmatprep.subr.mxu0 0.0
  %116 = vmatpush1.msra.mxu0 0.0
  %117 = vmatprep.mubr.f32.mxu0 0.0
  %118 = vmatmul.mubr.f32.gmra.mrb[0].mxu0 %v30
  %v119 = vpop.f32.mrb[0].mxu0
  %v120 = vadd.f32 0.0, %v119
  %v121 = vpop.f32.mrb[0].mxu0
  %122 = vmatprep.mubr.f32.mxu0 0.0
  %123 = vmatmul.mubr.f32.gmra.mrb[0].mxu0 %v33
  %v124 = vpop.f32.mrb[0].mxu0
  %v125 = vadd.f32 0.0, %v124
  %v126 = vpop.f32.mrb[0].mxu0
  %127 = vmatprep.mubr.f32.mxu0 0.0
  %128 = vmatmul.mubr.f32.gmra.mrb[0].mxu0 %v36
  %v129 = vpop.f32.mrb[0].mxu0
  %v130 = vadd.f32 0.0, %v129
  %v131 = vpop.f32.mrb[0].mxu0
  %132 = vmatprep.mubr.f32.mxu0 0.0
  %133 = vmatmul.mubr.f32.gmra.mrb[0].mxu0 %v39
  %v134 = vpop.f32.mrb[0].mxu0
  %v135 = vadd.f32 0.0, %v134
  %v136 = vpop.f32.mrb[0].mxu0
  %137 = vmatprep.mubr.f32.mxu0 0.0
  %138 = vmatmul.mubr.f32.gmra.mrb[0].mxu0 %v42
  %v139 = vpop.f32.mrb[0].mxu0
  %v140 = vadd.f32 0.0, %v139
  %v141 = vpop.f32.mrb[0].mxu0
  %142 = vmatprep.mubr.f32.mxu0 0.0
  %143 = vmatmul.mubr.f32.gmra.mrb[0].mxu0 %v45
  %v144 = vpop.f32.mrb[0].mxu0
  %v145 = vadd.f32 0.0, %v144
  %v146 = vpop.f32.mrb[0].mxu0
  %147 = vmatprep.mubr.f32.mxu0 0.0
  %148 = vmatmul.mubr.f32.gmra.mrb[0].mxu0 %v48
  %v149 = vpop.f32.mrb[0].mxu0
  %v150 = vadd.f32 0.0, %v149
  %v151 = vpop.f32.mrb[0].mxu0
  %152 = vmatprep.mubr.f32.mxu0 0.0
  %153 = vmatmul.mubr.f32.gmra.mrb[0].mxu0 %v51
  %v154 = vpop.f32.mrb[0].mxu0
  %v155 = vadd.f32 0.0, %v154
  %v156 = vpop.f32.mrb[0].mxu0
  %157 = vdwg.mxu0
  %vm158 = vcmask 523264
  %v160 = vsel %vm158, %v24, 0
  %v163 = vsel %vm158, %v25, 0
  %v166 = vsel %vm158, %v26, 0
  %v169 = vsel %vm158, %v27, 0
  %171 = vmatprep.subr.mxu0 0.0
  %172 = vmatpush1.msra.mxu0 %v120
  %173 = vmatprep.subr.mxu0 0.0
  %174 = vmatpush1.msra.mxu0 %v125
  %175 = vmatprep.subr.mxu0 0.0
  %176 = vmatpush1.msra.mxu0 %v130
  %177 = vmatprep.subr.mxu0 0.0
  %178 = vmatpush1.msra.mxu0 %v135
  %179 = vmatprep.subr.mxu0 0.0
  %180 = vmatpush1.msra.mxu0 %v140
  %181 = vmatprep.subr.mxu0 0.0
  %182 = vmatpush1.msra.mxu0 %v145
  %183 = vmatprep.subr.mxu0 0.0
  %184 = vmatpush1.msra.mxu0 %v150
  %185 = vmatprep.subr.mxu0 0.0
  %186 = vmatpush1.msra.mxu0 %v155
  %187 = vmatprep.subr.mxu0 0.0
  %188 = vmatpush1.msra.mxu0 0.0
  %189 = vmatprep.subr.mxu0 0.0
  %190 = vmatpush1.msra.mxu0 0.0
  %191 = vmatprep.subr.mxu0 0.0
  %192 = vmatpush1.msra.mxu0 0.0
  %193 = vmatprep.subr.mxu0 0.0
  %194 = vmatpush1.msra.mxu0 0.0
  %195 = vmatprep.subr.mxu0 0.0
  %196 = vmatpush1.msra.mxu0 0.0
  %197 = vmatprep.subr.mxu0 0.0
  %198 = vmatpush1.msra.mxu0 0.0
  %199 = vmatprep.subr.mxu0 0.0
  %200 = vmatpush1.msra.mxu0 0.0
  %201 = vmatprep.subr.mxu0 0.0
  %202 = vmatpush1.msra.mxu0 0.0
  %203 = vmatprep.subr.mxu0 0.0
  %204 = vmatpush1.msra.mxu0 0.0
  %205 = vmatprep.subr.mxu0 0.0
  %206 = vmatpush1.msra.mxu0 0.0
  %207 = vmatprep.subr.mxu0 0.0
  %208 = vmatpush1.msra.mxu0 0.0
  %209 = vmatprep.subr.mxu0 0.0
  %210 = vmatpush1.msra.mxu0 0.0
  %211 = vmatprep.subr.mxu0 0.0
  %212 = vmatpush1.msra.mxu0 0.0
  %213 = vmatprep.subr.mxu0 0.0
  %214 = vmatpush1.msra.mxu0 0.0
  %215 = vmatprep.subr.mxu0 0.0
  %216 = vmatpush1.msra.mxu0 0.0
  %217 = vmatprep.subr.mxu0 0.0
  %218 = vmatpush1.msra.mxu0 0.0
  %219 = vmatprep.subr.mxu0 0.0
  %220 = vmatpush1.msra.mxu0 0.0
  %221 = vmatprep.subr.mxu0 0.0
  %222 = vmatpush1.msra.mxu0 0.0
  %223 = vmatprep.subr.mxu0 0.0
  %224 = vmatpush1.msra.mxu0 0.0
  %225 = vmatprep.subr.mxu0 0.0
  %226 = vmatpush1.msra.mxu0 0.0
  %227 = vmatprep.subr.mxu0 0.0
  %228 = vmatpush1.msra.mxu0 0.0
  %229 = vmatprep.subr.mxu0 0.0
  %230 = vmatpush1.msra.mxu0 0.0
  %231 = vmatprep.subr.mxu0 0.0
  %232 = vmatpush1.msra.mxu0 0.0
  %233 = vmatprep.subr.mxu0 0.0
  %234 = vmatpush1.msra.mxu0 0.0
  %235 = vmatprep.mubr.f32.mxu0 0.0
  %236 = vmatmul.mubr.f32.gmra.mrb[0].mxu0 %v160
  %v237 = vpop.f32.mrb[0].mxu0
  %v238 = vadd.f32 0.0, %v237
  %v239 = vpop.f32.mrb[0].mxu0
  %240 = vmatprep.mubr.f32.mxu0 0.0
  %241 = vmatmul.mubr.f32.gmra.mrb[0].mxu0 %v163
  %v242 = vpop.f32.mrb[0].mxu0
  %v243 = vadd.f32 0.0, %v242
  %v244 = vpop.f32.mrb[0].mxu0
  %245 = vmatprep.mubr.f32.mxu0 0.0
  %246 = vmatmul.mubr.f32.gmra.mrb[0].mxu0 %v166
  %v247 = vpop.f32.mrb[0].mxu0
  %v248 = vadd.f32 0.0, %v247
  %v249 = vpop.f32.mrb[0].mxu0
  %250 = vmatprep.mubr.f32.mxu0 0.0
  %251 = vmatmul.mubr.f32.gmra.mrb[0].mxu0 %v169
  %v252 = vpop.f32.mrb[0].mxu0
  %v253 = vadd.f32 0.0, %v252
  %v254 = vpop.f32.mrb[0].mxu0
  %255 = vdwg.mxu0
  %vm256 = vcmask 64512
  %257 = vst.msk [vmem:[%s3] sm:$0xff] %vm256, %v238
  %258 = vst.msk [vmem:[%s3 + $0x8] sm:$0xff] %vm256, %v243
  %259 = vst.msk [vmem:[%s3 + $0x10] sm:$0xff] %vm256, %v248
  %260 = vst.msk [vmem:[%s3 + $0x18] sm:$0xff] %vm256, %v253
  %s261 = scalar_lea.vmem %s2, 64
  %v262 = vld [vmem:[%s261] sm:$0xff]
  %v263 = vld [vmem:[%s261 + $0x8] sm:$0xff]
  %v264 = vld [vmem:[%s261 + $0x10] sm:$0xff]
  %v265 = vld [vmem:[%s261 + $0x18] sm:$0xff]
  %v266 = vld [vmem:[%s261 + $0x20] sm:$0xff]
  %v267 = vld [vmem:[%s261 + $0x28] sm:$0xff]
  %v268 = vld [vmem:[%s261 + $0x30] sm:$0xff]
  %v269 = vld [vmem:[%s261 + $0x38] sm:$0xff]
  %s270 = scalar_lea.vmem %s1, 16
  %v271 = vld [vmem:[%s270] sm:$0xff]
  %v272 = vld [vmem:[%s270 + $0x8] sm:$0xff]
  %s273 = scalar_lea.vmem %s0, 32
  %v274 = vld [vmem:[%s273] sm:$0xff]
  %v275 = vld [vmem:[%s273 + $0x8] sm:$0xff]
  %v276 = vld [vmem:[%s273 + $0x10] sm:$0xff]
  %v277 = vld [vmem:[%s273 + $0x18] sm:$0xff]
  %v279 = vsel %vm28, %v262, 0
  %v282 = vsel %vm28, %v263, 0
  %v285 = vsel %vm28, %v264, 0
  %v288 = vsel %vm28, %v265, 0
  %v291 = vsel %vm28, %v266, 0
  %v294 = vsel %vm28, %v267, 0
  %v297 = vsel %vm28, %v268, 0
  %v300 = vsel %vm28, %v269, 0
  %302 = vmatprep.subr.mxu0 0.0
  %303 = vmatpush1.msra.mxu0 %v271
  %304 = vmatprep.subr.mxu0 0.0
  %305 = vmatpush1.msra.mxu0 %v272
  %306 = vmatprep.subr.mxu0 0.0
  %307 = vmatpush1.msra.mxu0 0.0
  %308 = vmatprep.subr.mxu0 0.0
  %309 = vmatpush1.msra.mxu0 0.0
  %310 = vmatprep.subr.mxu0 0.0
  %311 = vmatpush1.msra.mxu0 0.0
  %312 = vmatprep.subr.mxu0 0.0
  %313 = vmatpush1.msra.mxu0 0.0
  %314 = vmatprep.subr.mxu0 0.0
  %315 = vmatpush1.msra.mxu0 0.0
  %316 = vmatprep.subr.mxu0 0.0
  %317 = vmatpush1.msra.mxu0 0.0
  %318 = vmatprep.subr.mxu0 0.0
  %319 = vmatpush1.msra.mxu0 0.0
  %320 = vmatprep.subr.mxu0 0.0
  %321 = vmatpush1.msra.mxu0 0.0
  %322 = vmatprep.subr.mxu0 0.0
  %323 = vmatpush1.msra.mxu0 0.0
  %324 = vmatprep.subr.mxu0 0.0
  %325 = vmatpush1.msra.mxu0 0.0
  %326 = vmatprep.subr.mxu0 0.0
  %327 = vmatpush1.msra.mxu0 0.0
  %328 = vmatprep.subr.mxu0 0.0
  %329 = vmatpush1.msra.mxu0 0.0
  %330 = vmatprep.subr.mxu0 0.0
  %331 = vmatpush1.msra.mxu0 0.0
  %332 = vmatprep.subr.mxu0 0.0
  %333 = vmatpush1.msra.mxu0 0.0
  %334 = vmatprep.subr.mxu0 0.0
  %335 = vmatpush1.msra.mxu0 0.0
  %336 = vmatprep.subr.mxu0 0.0
  %337 = vmatpush1.msra.mxu0 0.0
  %338 = vmatprep.subr.mxu0 0.0
  %339 = vmatpush1.msra.mxu0 0.0
  %340 = vmatprep.subr.mxu0 0.0
  %341 = vmatpush1.msra.mxu0 0.0
  %342 = vmatprep.subr.mxu0 0.0
  %343 = vmatpush1.msra.mxu0 0.0
  %344 = vmatprep.subr.mxu0 0.0
  %345 = vmatpush1.msra.mxu0 0.0
  %346 = vmatprep.subr.mxu0 0.0
  %347 = vmatpush1.msra.mxu0 0.0
  %348 = vmatprep.subr.mxu0 0.0
  %349 = vmatpush1.msra.mxu0 0.0
  %350 = vmatprep.subr.mxu0 0.0
  %351 = vmatpush1.msra.mxu0 0.0
  %352 = vmatprep.subr.mxu0 0.0
  %353 = vmatpush1.msra.mxu0 0.0
  %354 = vmatprep.subr.mxu0 0.0
  %355 = vmatpush1.msra.mxu0 0.0
  %356 = vmatprep.subr.mxu0 0.0
  %357 = vmatpush1.msra.mxu0 0.0
  %358 = vmatprep.subr.mxu0 0.0
  %359 = vmatpush1.msra.mxu0 0.0
  %360 = vmatprep.subr.mxu0 0.0
  %361 = vmatpush1.msra.mxu0 0.0
  %362 = vmatprep.subr.mxu0 0.0
  %363 = vmatpush1.msra.mxu0 0.0
  %364 = vmatprep.subr.mxu0 0.0
  %365 = vmatpush1.msra.mxu0 0.0
  %366 = vmatprep.mubr.f32.mxu0 0.0
  %367 = vmatmul.mubr.f32.gmra.mrb[0].mxu0 %v279
  %v368 = vpop.f32.mrb[0].mxu0
  %v369 = vadd.f32 0.0, %v368
  %v370 = vpop.f32.mrb[0].mxu0
  %371 = vmatprep.mubr.f32.mxu0 0.0
  %372 = vmatmul.mubr.f32.gmra.mrb[0].mxu0 %v282
  %v373 = vpop.f32.mrb[0].mxu0
  %v374 = vadd.f32 0.0, %v373
  %v375 = vpop.f32.mrb[0].mxu0
  %376 = vmatprep.mubr.f32.mxu0 0.0
  %377 = vmatmul.mubr.f32.gmra.mrb[0].mxu0 %v285
  %v378 = vpop.f32.mrb[0].mxu0
  %v379 = vadd.f32 0.0, %v378
  %v380 = vpop.f32.mrb[0].mxu0
  %381 = vmatprep.mubr.f32.mxu0 0.0
  %382 = vmatmul.mubr.f32.gmra.mrb[0].mxu0 %v288
  %v383 = vpop.f32.mrb[0].mxu0
  %v384 = vadd.f32 0.0, %v383
  %v385 = vpop.f32.mrb[0].mxu0
  %386 = vmatprep.mubr.f32.mxu0 0.0
  %387 = vmatmul.mubr.f32.gmra.mrb[0].mxu0 %v291
  %v388 = vpop.f32.mrb[0].mxu0
  %v389 = vadd.f32 0.0, %v388
  %v390 = vpop.f32.mrb[0].mxu0
  %391 = vmatprep.mubr.f32.mxu0 0.0
  %392 = vmatmul.mubr.f32.gmra.mrb[0].mxu0 %v294
  %v393 = vpop.f32.mrb[0].mxu0
  %v394 = vadd.f32 0.0, %v393
  %v395 = vpop.f32.mrb[0].mxu0
  %396 = vmatprep.mubr.f32.mxu0 0.0
  %397 = vmatmul.mubr.f32.gmra.mrb[0].mxu0 %v297
  %v398 = vpop.f32.mrb[0].mxu0
  %v399 = vadd.f32 0.0, %v398
  %v400 = vpop.f32.mrb[0].mxu0
  %401 = vmatprep.mubr.f32.mxu0 0.0
  %402 = vmatmul.mubr.f32.gmra.mrb[0].mxu0 %v300
  %v403 = vpop.f32.mrb[0].mxu0
  %v404 = vadd.f32 0.0, %v403
  %v405 = vpop.f32.mrb[0].mxu0
  %406 = vdwg.mxu0
  %v408 = vsel %vm158, %v274, 0
  %v411 = vsel %vm158, %v275, 0
  %v414 = vsel %vm158, %v276, 0
  %v417 = vsel %vm158, %v277, 0
  %419 = vmatprep.subr.mxu0 0.0
  %420 = vmatpush1.msra.mxu0 %v369
  %421 = vmatprep.subr.mxu0 0.0
  %422 = vmatpush1.msra.mxu0 %v374
  %423 = vmatprep.subr.mxu0 0.0
  %424 = vmatpush1.msra.mxu0 %v379
  %425 = vmatprep.subr.mxu0 0.0
  %426 = vmatpush1.msra.mxu0 %v384
  %427 = vmatprep.subr.mxu0 0.0
  %428 = vmatpush1.msra.mxu0 %v389
  %429 = vmatprep.subr.mxu0 0.0
  %430 = vmatpush1.msra.mxu0 %v394
  %431 = vmatprep.subr.mxu0 0.0
  %432 = vmatpush1.msra.mxu0 %v399
  %433 = vmatprep.subr.mxu0 0.0
  %434 = vmatpush1.msra.mxu0 %v404
  %435 = vmatprep.subr.mxu0 0.0
  %436 = vmatpush1.msra.mxu0 0.0
  %437 = vmatprep.subr.mxu0 0.0
  %438 = vmatpush1.msra.mxu0 0.0
  %439 = vmatprep.subr.mxu0 0.0
  %440 = vmatpush1.msra.mxu0 0.0
  %441 = vmatprep.subr.mxu0 0.0
  %442 = vmatpush1.msra.mxu0 0.0
  %443 = vmatprep.subr.mxu0 0.0
  %444 = vmatpush1.msra.mxu0 0.0
  %445 = vmatprep.subr.mxu0 0.0
  %446 = vmatpush1.msra.mxu0 0.0
  %447 = vmatprep.subr.mxu0 0.0
  %448 = vmatpush1.msra.mxu0 0.0
  %449 = vmatprep.subr.mxu0 0.0
  %450 = vmatpush1.msra.mxu0 0.0
  %451 = vmatprep.subr.mxu0 0.0
  %452 = vmatpush1.msra.mxu0 0.0
  %453 = vmatprep.subr.mxu0 0.0
  %454 = vmatpush1.msra.mxu0 0.0
  %455 = vmatprep.subr.mxu0 0.0
  %456 = vmatpush1.msra.mxu0 0.0
  %457 = vmatprep.subr.mxu0 0.0
  %458 = vmatpush1.msra.mxu0 0.0
  %459 = vmatprep.subr.mxu0 0.0
  %460 = vmatpush1.msra.mxu0 0.0
  %461 = vmatprep.subr.mxu0 0.0
  %462 = vmatpush1.msra.mxu0 0.0
  %463 = vmatprep.subr.mxu0 0.0
  %464 = vmatpush1.msra.mxu0 0.0
  %465 = vmatprep.subr.mxu0 0.0
  %466 = vmatpush1.msra.mxu0 0.0
  %467 = vmatprep.subr.mxu0 0.0
  %468 = vmatpush1.msra.mxu0 0.0
  %469 = vmatprep.subr.mxu0 0.0
  %470 = vmatpush1.msra.mxu0 0.0
  %471 = vmatprep.subr.mxu0 0.0
  %472 = vmatpush1.msra.mxu0 0.0
  %473 = vmatprep.subr.mxu0 0.0
  %474 = vmatpush1.msra.mxu0 0.0
  %475 = vmatprep.subr.mxu0 0.0
  %476 = vmatpush1.msra.mxu0 0.0
  %477 = vmatprep.subr.mxu0 0.0
  %478 = vmatpush1.msra.mxu0 0.0
  %479 = vmatprep.subr.mxu0 0.0
  %480 = vmatpush1.msra.mxu0 0.0
  %481 = vmatprep.subr.mxu0 0.0
  %482 = vmatpush1.msra.mxu0 0.0
  %483 = vmatprep.mubr.f32.mxu0 0.0
  %484 = vmatmul.mubr.f32.gmra.mrb[0].mxu0 %v408
  %v485 = vpop.f32.mrb[0].mxu0
  %v486 = vadd.f32 0.0, %v485
  %v487 = vpop.f32.mrb[0].mxu0
  %488 = vmatprep.mubr.f32.mxu0 0.0
  %489 = vmatmul.mubr.f32.gmra.mrb[0].mxu0 %v411
  %v490 = vpop.f32.mrb[0].mxu0
  %v491 = vadd.f32 0.0, %v490
  %v492 = vpop.f32.mrb[0].mxu0
  %493 = vmatprep.mubr.f32.mxu0 0.0
  %494 = vmatmul.mubr.f32.gmra.mrb[0].mxu0 %v414
  %v495 = vpop.f32.mrb[0].mxu0
  %v496 = vadd.f32 0.0, %v495
  %v497 = vpop.f32.mrb[0].mxu0
  %498 = vmatprep.mubr.f32.mxu0 0.0
  %499 = vmatmul.mubr.f32.gmra.mrb[0].mxu0 %v417
  %v500 = vpop.f32.mrb[0].mxu0
  %v501 = vadd.f32 0.0, %v500
  %v502 = vpop.f32.mrb[0].mxu0
  %503 = vdwg.mxu0
  %s504 = scalar_lea.vmem %s3, 32
  %505 = vst.msk [vmem:[%s504] sm:$0xff] %vm256, %v486
  %506 = vst.msk [vmem:[%s504 + $0x8] sm:$0xff] %vm256, %v491
  %507 = vst.msk [vmem:[%s504 + $0x10] sm:$0xff] %vm256, %v496
  %508 = vst.msk [vmem:[%s504 + $0x18] sm:$0xff] %vm256, %v501
  // Predicated region
  $region14: #{tpu_custom_call.1} parent=0 // pred_check
    _
  $region15: #{tpu_custom_call.1} parent=0 // pred_check_branch
    %510 = sbr.rel (0) target = $region17
  $region16: #{tpu_custom_call.1} parent=0 // pred_region
    _
  $region17: #{tpu_custom_call.1} parent=0 // pred_fallthru
    _
  // Predicated region
  $region18: #{tpu_custom_call.1} parent=0 // pred_check
    _
  $region19: #{tpu_custom_call.1} parent=0 // pred_check_branch
    %512 = sbr.rel (0) target = $region21
  $region20: #{tpu_custom_call.1} parent=0 // pred_region
    _
  $region21: #{tpu_custom_call.1} parent=0 // pred_fallthru
    _

</llo_original>
